<compile_context>
chip_gen: v7x
topology: tpu7x:2x2x1
jax: 0.10.0
libtpu: 0.0.40
codegen_flags: <defaults>
</compile_context>

<pallas_src>
import jax
import jax.numpy as jnp
from jax import lax
from jax.experimental import pallas as pl
from jax.experimental.pallas import tpu as pltpu


def _round_up(x, m):
    return (x + m - 1) // m * m


def _vmem_limit_bytes():
    """Generation-aware scoped-VMEM limit (v5e/v6e: 128 MiB, v7x: 64 MiB phys)."""
    cap = 64 * 1024 * 1024
    try:
        info = pltpu.get_tpu_info()
        cap = int(getattr(info, "vmem_capacity_bytes", cap)) or cap
    except Exception:
        pass
    # Use at most half of physical VMEM for this kernel's pipeline buffers.
    return max(16 * 1024 * 1024, min(cap // 2, 64 * 1024 * 1024))


def _choose_tm(m, k_pad, c_pad, vmem_limit, tm_max=1024):
    """Largest M-tile (multiple of 8, <= tm_max) whose double-buffered working
    set fits in ~2/3 of the scoped VMEM limit."""
    budget = (2 * vmem_limit) // 3

    def need(t):
        return (2 * t * k_pad * 2        # A tiles, bf16, double-buffered
                + 2 * k_pad * c_pad * 2  # W, bf16 (conservatively double-buffered)
                + 2 * t * c_pad * 2      # Y tiles, bf16, double-buffered
                + 2 * t * c_pad * 4      # pass-2 f32 output tiles
                + 8 * c_pad * 4)         # stats / scale / shift (tiny)

    tm = max(8, min(_round_up(tm_max, 8), _round_up(m, 8)))
    while tm > 8 and need(tm) > budget:
        tm = max(8, _round_up(tm // 2, 8))
    return tm


# ----------------------------------------------------------------------------
# Kernel 1: conv-as-matmul tile (bf16 in, f32 accumulate) + per-tile BN stats
# ----------------------------------------------------------------------------
def _conv_stats_kernel(a_ref, w_ref, y_ref, psum_ref, psq_ref):
    # a_ref: (TM, K_pad) bf16 patch-matrix tile
    # w_ref: (K_pad, C_pad) bf16 reshaped conv weight (resident, constant index)
    # y_ref: (TM, C_pad) bf16 raw conv output tile
    # psum_ref / psq_ref: (1, 1, C_pad) f32 per-tile channel sum / sum-of-squares
    y = jnp.dot(a_ref[...], w_ref[...], preferred_element_type=jnp.float32)
    # Stats from the f32 MXU result (before the bf16 store rounds it).
    psum_ref[...] = jnp.sum(y, axis=0, keepdims=True)[None]
    psq_ref[...] = jnp.sum(y * y, axis=0, keepdims=True)[None]
    y_ref[...] = y.astype(y_ref.dtype)


# ----------------------------------------------------------------------------
# Kernel 2: fused BN normalize/affine + ReLU epilogue, tiled over M
# ----------------------------------------------------------------------------
def _bn_relu_kernel(y_ref, scale_ref, shift_ref, o_ref):
    y = y_ref[...].astype(jnp.float32)
    o_ref[...] = jnp.maximum(
        y * scale_ref[...] + shift_ref[...], 0.0
    ).astype(o_ref.dtype)


def conv_block_pallas(x, weight, gamma, beta, *, stride=1, padding=1,
                      dilation=1, eps=1e-5, tm_max=1024):
    """ConvBlock forward.  x: (N, C_in, H, W) NCHW float32."""
    n, c_in, h, w = x.shape
    c_out, c_in_w, kh, kw = weight.shape
    assert c_in == c_in_w, "groups != 1 not supported"

    h_out = (h + 2 * padding - dilation * (kh - 1) - 1) // stride + 1
    w_out = (w + 2 * padding - dilation * (kw - 1) - 1) // stride + 1

    # ---- glue: im2col in plain JAX -----------------------------------------
    # TODO(synk): for large activations replace the kh*kw im2col HBM expansion
    # with in-kernel shifted-window accumulation (halo'd NHWC slab DMA'd once
    # per M-tile + kh*kw small matmuls into a VMEM accumulator) to cut pass-1
    # input DMA ~5-9x for a 3x3 conv.
    x_p = jnp.pad(x, ((0, 0), (0, 0), (padding, padding), (padding, padding)))
    cols = []
    for i in range(kh):
        for j in range(kw):
            hi, wj = i * dilation, j * dilation
            cols.append(
                x_p[:, :, hi:hi + stride * h_out:stride,
                          wj:wj + stride * w_out:stride])
    # (N, C_in, kh*kw, H_out, W_out) -> (N, H_out, W_out, C_in, kh*kw)
    patches = jnp.stack(cols, axis=2).transpose(0, 3, 4, 1, 2)
    a_mat = patches.reshape(n * h_out * w_out, c_in * kh * kw)       # (M, K)
    w_mat = weight.reshape(c_out, c_in * kh * kw).T                  # (K, C_out)

    m, k = a_mat.shape
    # Lane-dense padding: K and C_out -> multiples of 128; M -> multiple of TM.
    # TODO(synk): for real channel counts (>128) on v6e/v7x, pad K/C_out to 256
    # so each weight load feeds a fuller 256x256 MXU pass.
    k_pad = _round_up(k, 128)
    c_pad = _round_up(c_out, 128)

    vmem_limit = _vmem_limit_bytes()
    tm = _choose_tm(m, k_pad, c_pad, vmem_limit, tm_max=tm_max)
    m_pad = _round_up(m, tm)
    num_tiles = m_pad // tm

    # bf16 operands: MXU-native contraction, half the A/W HBM traffic.
    a_pad = jnp.pad(a_mat, ((0, m_pad - m), (0, k_pad - k))).astype(jnp.bfloat16)
    w_pad = jnp.pad(w_mat, ((0, k_pad - k), (0, c_pad - c_out))).astype(jnp.bfloat16)
    gamma_p = jnp.pad(gamma.astype(jnp.float32), (0, c_pad - c_out))
    beta_p = jnp.pad(beta.astype(jnp.float32), (0, c_pad - c_out))

    # ---- pass 1: conv matmul + partial stats, tiled over M ------------------
    y_pad, psum, psq = pl.pallas_call(
        _conv_stats_kernel,
        out_shape=(
            jax.ShapeDtypeStruct((m_pad, c_pad), jnp.bfloat16),
            jax.ShapeDtypeStruct((num_tiles, 1, c_pad), jnp.float32),
            jax.ShapeDtypeStruct((num_tiles, 1, c_pad), jnp.float32),
        ),
        grid_spec=pltpu.PrefetchScalarGridSpec(
            num_scalar_prefetch=0,
            grid=(num_tiles,),
            in_specs=[
                pl.BlockSpec((tm, k_pad), lambda i: (i, 0)),
                # TODO(synk): single-buffer this constant-index weight block
                # (pipeline_mode=pl.Buffered(1)) to free one W-sized buffer on
                # v7x's 64 MiB VMEM.
                pl.BlockSpec((k_pad, c_pad), lambda i: (0, 0)),
            ],
            out_specs=[
                pl.BlockSpec((tm, c_pad), lambda i: (i, 0)),
                pl.BlockSpec((1, 1, c_pad), lambda i: (i, 0, 0)),
                pl.BlockSpec((1, 1, c_pad), lambda i: (i, 0, 0)),
            ],
        ),
        compiler_params=pltpu.CompilerParams(
            dimension_semantics=("parallel",),
            vmem_limit_bytes=vmem_limit,
        ),
        cost_estimate=pl.CostEstimate(
            flops=int(2 * m_pad * k_pad * c_pad),
            transcendentals=0,
            bytes_accessed=int(2 * (m_pad * k_pad + k_pad * c_pad + m_pad * c_pad)
                               + 8 * num_tiles * c_pad),
        ),
    )(a_pad, w_pad)

    # ---- tiny JAX glue: global BN stats -> per-channel scale/shift ----------
    sum_c = jnp.sum(psum[:, 0, :], axis=0)          # (C_pad,)
    sq_c = jnp.sum(psq[:, 0, :], axis=0)            # (C_pad,)
    inv_m = 1.0 / float(m)                          # real rows only (pad rows are 0)
    mean = sum_c * inv_m
    # TODO(synk): E[y^2] - mean^2 can cancel for large-|mean| activations;
    # switch to a centered / Welford-style combine if that regime matters.
    var = jnp.maximum(sq_c * inv_m - mean * mean, 0.0)   # biased, training-mode
    inv_std = lax.rsqrt(var + eps)
    scale = (gamma_p * inv_std).reshape(1, c_pad)
    shift = (beta_p - mean * gamma_p * inv_std).reshape(1, c_pad)

    # ---- pass 2: normalize + affine + ReLU, tiled over M --------------------
    out_pad = pl.pallas_call(
        _bn_relu_kernel,
        out_shape=jax.ShapeDtypeStruct((m_pad, c_pad), jnp.float32),
        grid_spec=pltpu.PrefetchScalarGridSpec(
            num_scalar_prefetch=0,
            grid=(num_tiles,),
            in_specs=[
                pl.BlockSpec((tm, c_pad), lambda i: (i, 0)),
                pl.BlockSpec((1, c_pad), lambda i: (0, 0)),
                pl.BlockSpec((1, c_pad), lambda i: (0, 0)),
            ],
            out_specs=pl.BlockSpec((tm, c_pad), lambda i: (i, 0)),
        ),
        compiler_params=pltpu.CompilerParams(
            dimension_semantics=("parallel",),
            vmem_limit_bytes=vmem_limit,
        ),
        cost_estimate=pl.CostEstimate(
            flops=int(3 * m_pad * c_pad),
            transcendentals=0,
            bytes_accessed=int(6 * m_pad * c_pad + 8 * c_pad),
        ),
    )(y_pad, scale, shift)

    # (M, C_pad) -> slice real rows/channels -> (N, H_out, W_out, C_out) -> NCHW.
    # TODO(synk): if the consumer can take NHWC (channel-padded) directly, drop
    # this transpose + narrow-channel slice to avoid an extra HBM round trip.
    out = out_pad[:m, :c_out].reshape(n, h_out, w_out, c_out)
    return out.transpose(0, 3, 1, 2)


# ----------------------------------------------------------------------------
# Pure-JAX reference (for correctness check)
# ----------------------------------------------------------------------------
def conv_block_ref(x, weight, gamma, beta, *, stride=1, padding=1, dilation=1,
                   eps=1e-5):
    y = lax.conv_general_dilated(
        x, weight,
        window_strides=(stride, stride),
        padding=[(padding, padding), (padding, padding)],
        rhs_dilation=(dilation, dilation),
        dimension_numbers=("NCHW", "OIHW", "NCHW"),
    )
    mean = jnp.mean(y, axis=(0, 2, 3), keepdims=True)
    var = jnp.mean((y - mean) ** 2, axis=(0, 2, 3), keepdims=True)
    y_hat = (y - mean) * lax.rsqrt(var + eps)
    out = y_hat * gamma.reshape(1, -1, 1, 1) + beta.reshape(1, -1, 1, 1)
    return jnp.maximum(out, 0.0)


if __name__ == "__main__":
    key = jax.random.PRNGKey(0)
    k_x, k_w = jax.random.split(key)

    # Small shapes consistent with the module: N=2, C_in=4, H=W=16,
    # C_out=8, kernel_size=3, stride=1, padding=1.
    N, C_IN, H, W = 2, 4, 16, 16
    C_OUT, KH, KW = 8, 3, 3

    x = jax.random.normal(k_x, (N, C_IN, H, W), dtype=jnp.float32)
    weight = jax.random.normal(k_w, (C_OUT, C_IN, KH, KW), dtype=jnp.float32) * 0.1
    gamma = jnp.ones((C_OUT,), dtype=jnp.float32)   # BatchNorm2d default init
    beta = jnp.zeros((C_OUT,), dtype=jnp.float32)

    out = conv_block_pallas(x, weight, gamma, beta, stride=1, padding=1)
    out = jax.block_until_ready(out)

    ref = conv_block_ref(x, weight, gamma, beta, stride=1, padding=1)
    assert out.shape == (N, C_OUT, H, W), out.shape
    # bf16 operands + bf16 Y intermediate (f32 accumulation): loosened tolerance.
    assert jnp.allclose(out, ref, atol=7.5e-2, rtol=5e-2), (
        float(jnp.max(jnp.abs(out - ref)))
    )
    print("KERNEL_OK")
</pallas_src>

<mosaic_0001>
module attributes {stable_mosaic.version = 11 : i64} {
  func.func @_conv_stats_kernel(%arg0: i32, %arg1: memref<512x128xbf16, #tpu.memory_space<vmem>>, %arg2: memref<128x128xbf16, #tpu.memory_space<vmem>>, %arg3: memref<512x128xbf16, #tpu.memory_space<vmem>>, %arg4: memref<1x1x128xf32, #tpu.memory_space<vmem>>, %arg5: memref<1x1x128xf32, #tpu.memory_space<vmem>>) attributes {dimension_semantics = [#tpu.dimension_semantics<parallel>], iteration_bounds = array<i64: 1>, scalar_prefetch = 0 : i64, scratch_operands = 0 : i64, tpu.core_type = #tpu.core_type<tc>, window_params = [{transform_indices = @transform_0, window_bounds = array<i64: 512, 128>}, {pipeline_mode = #tpu.pipeline_mode<synchronous>, transform_indices = @transform_1, window_bounds = array<i64: 128, 128>}, {transform_indices = @transform_2, window_bounds = array<i64: 512, 128>}, {transform_indices = @transform_3, window_bounds = array<i64: 1, 1, 128>}, {transform_indices = @transform_4, window_bounds = array<i64: 1, 1, 128>}]} {
    %c0 = arith.constant 0 : index
    %c0_0 = arith.constant 0 : index
    %0 = vector.load %arg1[%c0, %c0_0] : memref<512x128xbf16, #tpu.memory_space<vmem>>, vector<512x128xbf16>
    %c0_1 = arith.constant 0 : index
    %c0_2 = arith.constant 0 : index
    %1 = vector.load %arg2[%c0_1, %c0_2] : memref<128x128xbf16, #tpu.memory_space<vmem>>, vector<128x128xbf16>
    %cst = arith.constant dense<0.000000e+00> : vector<512x128xf32>
    %2 = tpu.matmul %0, %1, %cst {dimension_numbers = #tpu.dot_dimension_numbers<[1], [0], [0], [1], [0, 0, 1, 1], [], []>} : vector<512x128xbf16>, vector<128x128xbf16>, vector<512x128xf32> -> vector<512x128xf32>
    %cst_3 = arith.constant dense<0.000000e+00> : vector<128xf32>
    %3 = vector.multi_reduction <add>, %2, %cst_3 [0] : vector<512x128xf32> to vector<128xf32>
    %4 = vector.shape_cast %3 : vector<128xf32> to vector<1x128xf32>
    %5 = vector.shape_cast %4 : vector<1x128xf32> to vector<1x1x128xf32>
    %c0_4 = arith.constant 0 : index
    %c0_5 = arith.constant 0 : index
    %c0_6 = arith.constant 0 : index
    %6 = vector.load %arg4[%c0_4, %c0_5, %c0_6] : memref<1x1x128xf32, #tpu.memory_space<vmem>>, vector<1x1x128xf32>
    tpu.vector_store %arg4[%c0_4, %c0_5, %c0_6], %5 {strides = array<i32>} : memref<1x1x128xf32, #tpu.memory_space<vmem>>, vector<1x1x128xf32>,
    %7 = arith.mulf %2, %2 : vector<512x128xf32>
    %cst_7 = arith.constant dense<0.000000e+00> : vector<128xf32>
    %8 = vector.multi_reduction <add>, %7, %cst_7 [0] : vector<512x128xf32> to vector<128xf32>
    %9 = vector.shape_cast %8 : vector<128xf32> to vector<1x128xf32>
    %10 = vector.shape_cast %9 : vector<1x128xf32> to vector<1x1x128xf32>
    %c0_8 = arith.constant 0 : index
    %c0_9 = arith.constant 0 : index
    %c0_10 = arith.constant 0 : index
    %11 = vector.load %arg5[%c0_8, %c0_9, %c0_10] : memref<1x1x128xf32, #tpu.memory_space<vmem>>, vector<1x1x128xf32>
    tpu.vector_store %arg5[%c0_8, %c0_9, %c0_10], %10 {strides = array<i32>} : memref<1x1x128xf32, #tpu.memory_space<vmem>>, vector<1x1x128xf32>,
    %12 = arith.truncf %2 : vector<512x128xf32> to vector<512x128xbf16>
    %c0_11 = arith.constant 0 : index
    %c0_12 = arith.constant 0 : index
    %13 = vector.load %arg3[%c0_11, %c0_12] : memref<512x128xbf16, #tpu.memory_space<vmem>>, vector<512x128xbf16>
    tpu.vector_store %arg3[%c0_11, %c0_12], %12 {strides = array<i32>} : memref<512x128xbf16, #tpu.memory_space<vmem>>, vector<512x128xbf16>,
    return
  }
  func.func @transform_0(%arg0: i32) -> (i32, i32) {
    %c0_i32 = arith.constant 0 : i32
    %c0_i32_0 = arith.constant 0 : i32
    return %arg0, %c0_i32 : i32, i32
  }
  func.func @transform_1(%arg0: i32) -> (i32, i32) {
    %c0_i32 = arith.constant 0 : i32
    %c0_i32_0 = arith.constant 0 : i32
    %c0_i32_1 = arith.constant 0 : i32
    return %c0_i32, %c0_i32_0 : i32, i32
  }
  func.func @transform_2(%arg0: i32) -> (i32, i32) {
    %c0_i32 = arith.constant 0 : i32
    %c0_i32_0 = arith.constant 0 : i32
    return %arg0, %c0_i32 : i32, i32
  }
  func.func @transform_3(%arg0: i32) -> (i32, i32, i32) {
    %c0_i32 = arith.constant 0 : i32
    %c0_i32_0 = arith.constant 0 : i32
    %c0_i32_1 = arith.constant 0 : i32
    return %arg0, %c0_i32, %c0_i32_0 : i32, i32, i32
  }
  func.func @transform_4(%arg0: i32) -> (i32, i32, i32) {
    %c0_i32 = arith.constant 0 : i32
    %c0_i32_0 = arith.constant 0 : i32
    %c0_i32_1 = arith.constant 0 : i32
    return %arg0, %c0_i32, %c0_i32_0 : i32, i32, i32
  }
}

</mosaic_0001>

<llo_original>
// kernel: tpu_custom_call.1
$region0: #{tpu_custom_call.1}
  #allocation0 [shape = 'u32[]', space=smem, size = 0x4, offset = 0x4, fixed_abs, tag = 'smem constant byte address 0x4 - core index']
  #allocation1 [shape = 'u32[144,128]{1,0:T(1,128)}', space=vmem, size = 0x12000, scoped, tag = 'internal scratch']
  %s0 = inlined_call_operand.hbm [shape: bf16[512,128], index: 0, kind: input, shape index: {}]
  %s1 = inlined_call_operand.hbm [shape: bf16[128,128], index: 1, kind: input, shape index: {}]
  %s2 = inlined_call_operand.hbm [shape: bf16[512,128], index: 2, kind: output, shape index: {0}]
  %s3 = inlined_call_operand.hbm [shape: f32[1,1,128], index: 3, kind: output, shape index: {1}]
  %s4 = inlined_call_operand.hbm [shape: f32[1,1,128], index: 4, kind: output, shape index: {2}]
  %5 = xla_tuple %s2, %s3, %s4
  %s6 = sld [smem:[#allocation0]]
  $region42: #{tpu_custom_call.1} parent=0
    _
  %s8 = ssub.s32 1, %s6
  %s9 = scalar_select 0, %s8, %s6
  $region1: #{tpu_custom_call.1} parent=0
    #allocation2 [shape = 'u8[131072]{0}', space=vmem, size = 0x20000, scoped, tag = 'input window, operand 0, single buffered']
    #allocation3 [shape = 's32[1]{0}', space=sflag, size = 0x4, scoped, tag = 'scoped memory for tpu_custom_call.1']
    #allocation4 [shape = 's32[1]{0}', space=sflag, size = 0x4, scoped, tag = 'scoped memory for tpu_custom_call.1']
    #allocation5 [shape = 'u8[32768]{0}', space=vmem, size = 0x8000, scoped, tag = 'input window, operand 1, single buffered']
    #allocation6 [shape = 's32[1]{0}', space=sflag, size = 0x4, scoped, tag = 'scoped memory for tpu_custom_call.1']
    #allocation7 [shape = 'u8[131072]{0}', space=vmem, size = 0x20000, scoped, tag = 'output window, operand 0, single buffered']
    #allocation8 [shape = 'u8[512]{0}', space=vmem, size = 0x400, scoped, tag = 'output window, operand 1, single buffered']
    #allocation9 [shape = 's32[1]{0}', space=sflag, size = 0x4, scoped, tag = 'scoped memory for tpu_custom_call.1']
    #allocation10 [shape = 'u8[512]{0}', space=vmem, size = 0x400, scoped, tag = 'output window, operand 2, single buffered']
    %10 = vsyncpa [#allocation3], 0
    %11 = vsyncpa [#allocation6], 0
    %12 = vsyncpa [#allocation4], 0
    %13 = vsyncpa [#allocation9], 0
    // Predicated region
    $region2: #{tpu_custom_call.1} parent=1 // pred_check
      _
    $region3: #{tpu_custom_call.1} parent=1 // pred_check_branch
      %15 = sbr.rel (0) target = $region5
    $region4: #{tpu_custom_call.1} parent=1 // pred_region
      %s17 = ssub.s32 4096, 4096
      %18 = vsyncadd [#allocation3], %s17
      %s19 = sshll.u32 [#allocation2], 4
      %s20 = int_to_ptr.vmem [resolvable:$true] %s19
      %25 = dma.hbm_to_vmem [thread:$0]  %s0, 4096, %s20, [#allocation3], 64, 64, 4
    $region5: #{tpu_custom_call.1} parent=1 // pred_fallthru
      _
    // Predicated region
    $region6: #{tpu_custom_call.1} parent=1 // pred_check
      _
    $region7: #{tpu_custom_call.1} parent=1 // pred_check_branch
      %27 = sbr.rel (0) target = $region9
    $region8: #{tpu_custom_call.1} parent=1 // pred_region
      %s29 = ssub.s32 1024, 1024
      %30 = vsyncadd [#allocation6], %s29
      %s31 = sshll.u32 [#allocation5], 4
      %s32 = int_to_ptr.vmem [resolvable:$true] %s31
      %37 = dma.hbm_to_vmem [thread:$0]  %s1, 1024, %s32, [#allocation6], 64, 64, 4
    $region9: #{tpu_custom_call.1} parent=1 // pred_fallthru
      _
    // Predicated region
    $region10: #{tpu_custom_call.1} parent=1 // pred_check
      _
    $region11: #{tpu_custom_call.1} parent=1 // pred_check_branch
      %39 = sbr.rel (0) target = $region13
    $region12: #{tpu_custom_call.1} parent=1 // pred_region
      %40 = dma.done [#allocation3], 4096
    $region13: #{tpu_custom_call.1} parent=1 // pred_fallthru
      _
    // Predicated region
    $region14: #{tpu_custom_call.1} parent=1 // pred_check
      _
    $region15: #{tpu_custom_call.1} parent=1 // pred_check_branch
      %42 = sbr.rel (0) target = $region17
    $region16: #{tpu_custom_call.1} parent=1 // pred_region
      %43 = dma.done [#allocation6], 1024
    $region17: #{tpu_custom_call.1} parent=1 // pred_fallthru
      _
    %v45 = vld [vmem:[#allocation2] sm:$0xf]
    %v46 = vld [vmem:[#allocation2 + $0x4] sm:$0xf]
    %v47 = vld [vmem:[#allocation2 + $0x8] sm:$0xf]
    %v48 = vld [vmem:[#allocation2 + $0xc] sm:$0xf]
    %v49 = vld [vmem:[#allocation2 + $0x10] sm:$0xf]
    %v50 = vld [vmem:[#allocation2 + $0x14] sm:$0xf]
    %v51 = vld [vmem:[#allocation2 + $0x18] sm:$0xf]
    %v52 = vld [vmem:[#allocation2 + $0x1c] sm:$0xf]
    %v53 = vld [vmem:[#allocation2 + $0x20] sm:$0xf]
    %v54 = vld [vmem:[#allocation2 + $0x24] sm:$0xf]
    %v55 = vld [vmem:[#allocation2 + $0x28] sm:$0xf]
    %v56 = vld [vmem:[#allocation2 + $0x2c] sm:$0xf]
    %v57 = vld [vmem:[#allocation2 + $0x30] sm:$0xf]
    %v58 = vld [vmem:[#allocation2 + $0x34] sm:$0xf]
    %v59 = vld [vmem:[#allocation2 + $0x38] sm:$0xf]
    %v60 = vld [vmem:[#allocation2 + $0x3c] sm:$0xf]
    %v61 = vld [vmem:[#allocation2 + $0x40] sm:$0xf]
    %v62 = vld [vmem:[#allocation2 + $0x44] sm:$0xf]
    %v63 = vld [vmem:[#allocation2 + $0x48] sm:$0xf]
    %v64 = vld [vmem:[#allocation2 + $0x4c] sm:$0xf]
    %v65 = vld [vmem:[#allocation2 + $0x50] sm:$0xf]
    %v66 = vld [vmem:[#allocation2 + $0x54] sm:$0xf]
    %v67 = vld [vmem:[#allocation2 + $0x58] sm:$0xf]
    %v68 = vld [vmem:[#allocation2 + $0x5c] sm:$0xf]
    %v69 = vld [vmem:[#allocation2 + $0x60] sm:$0xf]
    %v70 = vld [vmem:[#allocation2 + $0x64] sm:$0xf]
    %v71 = vld [vmem:[#allocation2 + $0x68] sm:$0xf]
    %v72 = vld [vmem:[#allocation2 + $0x6c] sm:$0xf]
    %v73 = vld [vmem:[#allocation2 + $0x70] sm:$0xf]
    %v74 = vld [vmem:[#allocation2 + $0x74] sm:$0xf]
    %v75 = vld [vmem:[#allocation2 + $0x78] sm:$0xf]
    %v76 = vld [vmem:[#allocation2 + $0x7c] sm:$0xf]
    %v77 = vld [vmem:[#allocation2 + $0x80] sm:$0xf]
    %v78 = vld [vmem:[#allocation2 + $0x84] sm:$0xf]
    %v79 = vld [vmem:[#allocation2 + $0x88] sm:$0xf]
    %v80 = vld [vmem:[#allocation2 + $0x8c] sm:$0xf]
    %v81 = vld [vmem:[#allocation2 + $0x90] sm:$0xf]
    %v82 = vld [vmem:[#allocation2 + $0x94] sm:$0xf]
    %v83 = vld [vmem:[#allocation2 + $0x98] sm:$0xf]
    %v84 = vld [vmem:[#allocation2 + $0x9c] sm:$0xf]
    %v85 = vld [vmem:[#allocation2 + $0xa0] sm:$0xf]
    %v86 = vld [vmem:[#allocation2 + $0xa4] sm:$0xf]
    %v87 = vld [vmem:[#allocation2 + $0xa8] sm:$0xf]
    %v88 = vld [vmem:[#allocation2 + $0xac] sm:$0xf]
    %v89 = vld [vmem:[#allocation2 + $0xb0] sm:$0xf]
    %v90 = vld [vmem:[#allocation2 + $0xb4] sm:$0xf]
    %v91 = vld [vmem:[#allocation2 + $0xb8] sm:$0xf]
    %v92 = vld [vmem:[#allocation2 + $0xbc] sm:$0xf]
    %v93 = vld [vmem:[#allocation2 + $0xc0] sm:$0xf]
    %v94 = vld [vmem:[#allocation2 + $0xc4] sm:$0xf]
    %v95 = vld [vmem:[#allocation2 + $0xc8] sm:$0xf]
    %v96 = vld [vmem:[#allocation2 + $0xcc] sm:$0xf]
    %v97 = vld [vmem:[#allocation2 + $0xd0] sm:$0xf]
    %v98 = vld [vmem:[#allocation2 + $0xd4] sm:$0xf]
    %v99 = vld [vmem:[#allocation2 + $0xd8] sm:$0xf]
    %v100 = vld [vmem:[#allocation2 + $0xdc] sm:$0xf]
    %v101 = vld [vmem:[#allocation2 + $0xe0] sm:$0xf]
    %v102 = vld [vmem:[#allocation2 + $0xe4] sm:$0xf]
    %v103 = vld [vmem:[#allocation2 + $0xe8] sm:$0xf]
    %v104 = vld [vmem:[#allocation2 + $0xec] sm:$0xf]
    %v105 = vld [vmem:[#allocation2 + $0xf0] sm:$0xf]
    %v106 = vld [vmem:[#allocation2 + $0xf4] sm:$0xf]
    %v107 = vld [vmem:[#allocation2 + $0xf8] sm:$0xf]
    %v108 = vld [vmem:[#allocation2 + $0xfc] sm:$0xf]
    %v109 = vld [vmem:[#allocation5] sm:$0xf]
    %v110 = vld [vmem:[#allocation5 + $0x4] sm:$0xf]
    %v111 = vld [vmem:[#allocation5 + $0x8] sm:$0xf]
    %v112 = vld [vmem:[#allocation5 + $0xc] sm:$0xf]
    %v113 = vld [vmem:[#allocation5 + $0x10] sm:$0xf]
    %v114 = vld [vmem:[#allocation5 + $0x14] sm:$0xf]
    %v115 = vld [vmem:[#allocation5 + $0x18] sm:$0xf]
    %v116 = vld [vmem:[#allocation5 + $0x1c] sm:$0xf]
    %v117 = vld [vmem:[#allocation5 + $0x20] sm:$0xf]
    %v118 = vld [vmem:[#allocation5 + $0x24] sm:$0xf]
    %v119 = vld [vmem:[#allocation5 + $0x28] sm:$0xf]
    %v120 = vld [vmem:[#allocation5 + $0x2c] sm:$0xf]
    %v121 = vld [vmem:[#allocation5 + $0x30] sm:$0xf]
    %v122 = vld [vmem:[#allocation5 + $0x34] sm:$0xf]
    %v123 = vld [vmem:[#allocation5 + $0x38] sm:$0xf]
    %v124 = vld [vmem:[#allocation5 + $0x3c] sm:$0xf]
    %v189 = vunpack.c.l.b16 %v45
    %v190 = vunpack.c.l.b16 %v46
    %v191 = vunpack.c.l.b16 %v47
    %v192 = vunpack.c.l.b16 %v48
    %v193 = vunpack.c.l.b16 %v49
    %v194 = vunpack.c.l.b16 %v50
    %v195 = vunpack.c.l.b16 %v51
    %v196 = vunpack.c.l.b16 %v52
    %v197 = vunpack.c.l.b16 %v53
    %v198 = vunpack.c.l.b16 %v54
    %v199 = vunpack.c.l.b16 %v55
    %v200 = vunpack.c.l.b16 %v56
    %v201 = vunpack.c.l.b16 %v57
    %v202 = vunpack.c.l.b16 %v58
    %v203 = vunpack.c.l.b16 %v59
    %v204 = vunpack.c.l.b16 %v60
    %v205 = vunpack.c.l.b16 %v61
    %v206 = vunpack.c.l.b16 %v62
    %v207 = vunpack.c.l.b16 %v63
    %v208 = vunpack.c.l.b16 %v64
    %v209 = vunpack.c.l.b16 %v65
    %v210 = vunpack.c.l.b16 %v66
    %v211 = vunpack.c.l.b16 %v67
    %v212 = vunpack.c.l.b16 %v68
    %v213 = vunpack.c.l.b16 %v69
    %v214 = vunpack.c.l.b16 %v70
    %v215 = vunpack.c.l.b16 %v71
    %v216 = vunpack.c.l.b16 %v72
    %v217 = vunpack.c.l.b16 %v73
    %v218 = vunpack.c.l.b16 %v74
    %v219 = vunpack.c.l.b16 %v75
    %v220 = vunpack.c.l.b16 %v76
    %v221 = vunpack.c.l.b16 %v77
    %v222 = vunpack.c.l.b16 %v78
    %v223 = vunpack.c.l.b16 %v79
    %v224 = vunpack.c.l.b16 %v80
    %v225 = vunpack.c.l.b16 %v81
    %v226 = vunpack.c.l.b16 %v82
    %v227 = vunpack.c.l.b16 %v83
    %v228 = vunpack.c.l.b16 %v84
    %v229 = vunpack.c.l.b16 %v85
    %v230 = vunpack.c.l.b16 %v86
    %v231 = vunpack.c.l.b16 %v87
    %v232 = vunpack.c.l.b16 %v88
    %v233 = vunpack.c.l.b16 %v89
    %v234 = vunpack.c.l.b16 %v90
    %v235 = vunpack.c.l.b16 %v91
    %v236 = vunpack.c.l.b16 %v92
    %v237 = vunpack.c.l.b16 %v93
    %v238 = vunpack.c.l.b16 %v94
    %v239 = vunpack.c.l.b16 %v95
    %v240 = vunpack.c.l.b16 %v96
    %v241 = vunpack.c.l.b16 %v97
    %v242 = vunpack.c.l.b16 %v98
    %v243 = vunpack.c.l.b16 %v99
    %v244 = vunpack.c.l.b16 %v100
    %v245 = vunpack.c.l.b16 %v101
    %v246 = vunpack.c.l.b16 %v102
    %v247 = vunpack.c.l.b16 %v103
    %v248 = vunpack.c.l.b16 %v104
    %v249 = vunpack.c.l.b16 %v105
    %v250 = vunpack.c.l.b16 %v106
    %v251 = vunpack.c.l.b16 %v107
    %v252 = vunpack.c.l.b16 %v108
    %v253 = vpack.c.b16 %v190, %v189
    %v254 = vpack.c.b16 %v192, %v191
    %v255 = vpack.c.b16 %v194, %v193
    %v256 = vpack.c.b16 %v196, %v195
    %v257 = vpack.c.b16 %v198, %v197
    %v258 = vpack.c.b16 %v200, %v199
    %v259 = vpack.c.b16 %v202, %v201
    %v260 = vpack.c.b16 %v204, %v203
    %v261 = vpack.c.b16 %v206, %v205
    %v262 = vpack.c.b16 %v208, %v207
    %v263 = vpack.c.b16 %v210, %v209
    %v264 = vpack.c.b16 %v212, %v211
    %v265 = vpack.c.b16 %v214, %v213
    %v266 = vpack.c.b16 %v216, %v215
    %v267 = vpack.c.b16 %v218, %v217
    %v268 = vpack.c.b16 %v220, %v219
    %v269 = vpack.c.b16 %v222, %v221
    %v270 = vpack.c.b16 %v224, %v223
    %v271 = vpack.c.b16 %v226, %v225
    %v272 = vpack.c.b16 %v228, %v227
    %v273 = vpack.c.b16 %v230, %v229
    %v274 = vpack.c.b16 %v232, %v231
    %v275 = vpack.c.b16 %v234, %v233
    %v276 = vpack.c.b16 %v236, %v235
    %v277 = vpack.c.b16 %v238, %v237
    %v278 = vpack.c.b16 %v240, %v239
    %v279 = vpack.c.b16 %v242, %v241
    %v280 = vpack.c.b16 %v244, %v243
    %v281 = vpack.c.b16 %v246, %v245
    %v282 = vpack.c.b16 %v248, %v247
    %v283 = vpack.c.b16 %v250, %v249
    %v284 = vpack.c.b16 %v252, %v251
    %v333 = vunpack.c.l.b16 %v109
    %v334 = vunpack.c.l.b16 %v110
    %v335 = vunpack.c.l.b16 %v111
    %v336 = vunpack.c.l.b16 %v112
    %v337 = vunpack.c.l.b16 %v113
    %v338 = vunpack.c.l.b16 %v114
    %v339 = vunpack.c.l.b16 %v115
    %v340 = vunpack.c.l.b16 %v116
    %v341 = vunpack.c.l.b16 %v117
    %v342 = vunpack.c.l.b16 %v118
    %v343 = vunpack.c.l.b16 %v119
    %v344 = vunpack.c.l.b16 %v120
    %v345 = vunpack.c.l.b16 %v121
    %v346 = vunpack.c.l.b16 %v122
    %v347 = vunpack.c.l.b16 %v123
    %v348 = vunpack.c.l.b16 %v124
    %v349 = vpack.c.b16 %v334, %v333
    %v350 = vpack.c.b16 %v336, %v335
    %v351 = vpack.c.b16 %v338, %v337
    %v352 = vpack.c.b16 %v340, %v339
    %v353 = vpack.c.b16 %v342, %v341
    %v354 = vpack.c.b16 %v344, %v343
    %v355 = vpack.c.b16 %v346, %v345
    %v356 = vpack.c.b16 %v348, %v347
    %365 = vmatprep.subr.bf16.mxu0 0
    %366 = vmatpush1.bf16.msra.mxu0 %v349
    %367 = vmatprep.subr.bf16.mxu0 0
    %368 = vmatpush1.bf16.msra.mxu0 %v350
    %369 = vmatprep.subr.bf16.mxu0 0
    %370 = vmatpush1.bf16.msra.mxu0 %v351
    %371 = vmatprep.subr.bf16.mxu0 0
    %372 = vmatpush1.bf16.msra.mxu0 %v352
    %373 = vmatprep.subr.bf16.mxu0 0
    %374 = vmatpush1.bf16.msra.mxu0 %v353
    %375 = vmatprep.subr.bf16.mxu0 0
    %376 = vmatpush1.bf16.msra.mxu0 %v354
    %377 = vmatprep.subr.bf16.mxu0 0
    %378 = vmatpush1.bf16.msra.mxu0 %v355
    %379 = vmatprep.subr.bf16.mxu0 0
    %380 = vmatpush1.bf16.msra.mxu0 %v356
    %381 = vmatprep.subr.bf16.mxu0 0
    %382 = vmatpush1.bf16.msra.mxu0 0
    %383 = vmatprep.subr.bf16.mxu0 0
    %384 = vmatpush1.bf16.msra.mxu0 0
    %385 = vmatprep.subr.bf16.mxu0 0
    %386 = vmatpush1.bf16.msra.mxu0 0
    %387 = vmatprep.subr.bf16.mxu0 0
    %388 = vmatpush1.bf16.msra.mxu0 0
    %389 = vmatprep.subr.bf16.mxu0 0
    %390 = vmatpush1.bf16.msra.mxu0 0
    %391 = vmatprep.subr.bf16.mxu0 0
    %392 = vmatpush1.bf16.msra.mxu0 0
    %393 = vmatprep.subr.bf16.mxu0 0
    %394 = vmatpush1.bf16.msra.mxu0 0
    %395 = vmatprep.subr.bf16.mxu0 0
    %396 = vmatpush1.bf16.msra.mxu0 0
    %397 = vmatprep.mubr.bf16.mxu0 0
    %398 = vmatmul.mubr.bf16.gmra.mrb[0].mxu0 %v253
    %v399 = vpop.f32.mrb[0].mxu0
    %v400 = vadd.f32 0.0, %v399
    %v401 = vpop.f32.mrb[0].mxu0
    %v402 = vpop.f32.mrb[0].mxu0
    %v403 = vadd.f32 0.0, %v402
    %v404 = vpop.f32.mrb[0].mxu0
    %405 = vmatprep.mubr.bf16.mxu0 0
    %406 = vmatmul.mubr.bf16.gmra.mrb[0].mxu0 %v254
    %v407 = vpop.f32.mrb[0].mxu0
    %v408 = vadd.f32 0.0, %v407
    %v409 = vpop.f32.mrb[0].mxu0
    %v410 = vpop.f32.mrb[0].mxu0
    %v411 = vadd.f32 0.0, %v410
    %v412 = vpop.f32.mrb[0].mxu0
    %413 = vmatprep.mubr.bf16.mxu0 0
    %414 = vmatmul.mubr.bf16.gmra.mrb[0].mxu0 %v255
    %v415 = vpop.f32.mrb[0].mxu0
    %v416 = vadd.f32 0.0, %v415
    %v417 = vpop.f32.mrb[0].mxu0
    %v418 = vpop.f32.mrb[0].mxu0
    %v419 = vadd.f32 0.0, %v418
    %v420 = vpop.f32.mrb[0].mxu0
    %421 = vmatprep.mubr.bf16.mxu0 0
    %422 = vmatmul.mubr.bf16.gmra.mrb[0].mxu0 %v256
    %v423 = vpop.f32.mrb[0].mxu0
    %v424 = vadd.f32 0.0, %v423
    %v425 = vpop.f32.mrb[0].mxu0
    %v426 = vpop.f32.mrb[0].mxu0
    %v427 = vadd.f32 0.0, %v426
    %v428 = vpop.f32.mrb[0].mxu0
    %429 = vmatprep.mubr.bf16.mxu0 0
    %430 = vmatmul.mubr.bf16.gmra.mrb[0].mxu0 %v257
    %v431 = vpop.f32.mrb[0].mxu0
    %v432 = vadd.f32 0.0, %v431
    %v433 = vpop.f32.mrb[0].mxu0
    %v434 = vpop.f32.mrb[0].mxu0
    %v435 = vadd.f32 0.0, %v434
    %v436 = vpop.f32.mrb[0].mxu0
    %437 = vmatprep.mubr.bf16.mxu0 0
    %438 = vmatmul.mubr.bf16.gmra.mrb[0].mxu0 %v258
    %v439 = vpop.f32.mrb[0].mxu0
    %v440 = vadd.f32 0.0, %v439
    %v441 = vpop.f32.mrb[0].mxu0
    %v442 = vpop.f32.mrb[0].mxu0
    %v443 = vadd.f32 0.0, %v442
    %v444 = vpop.f32.mrb[0].mxu0
    %445 = vmatprep.mubr.bf16.mxu0 0
    %446 = vmatmul.mubr.bf16.gmra.mrb[0].mxu0 %v259
    %v447 = vpop.f32.mrb[0].mxu0
    %v448 = vadd.f32 0.0, %v447
    %v449 = vpop.f32.mrb[0].mxu0
    %v450 = vpop.f32.mrb[0].mxu0
    %v451 = vadd.f32 0.0, %v450
    %v452 = vpop.f32.mrb[0].mxu0
    %453 = vmatprep.mubr.bf16.mxu0 0
    %454 = vmatmul.mubr.bf16.gmra.mrb[0].mxu0 %v260
    %v455 = vpop.f32.mrb[0].mxu0
    %v456 = vadd.f32 0.0, %v455
    %v457 = vpop.f32.mrb[0].mxu0
    %v458 = vpop.f32.mrb[0].mxu0
    %v459 = vadd.f32 0.0, %v458
    %v460 = vpop.f32.mrb[0].mxu0
    %461 = vmatprep.mubr.bf16.mxu0 0
    %462 = vmatmul.mubr.bf16.gmra.mrb[0].mxu0 %v261
    %v463 = vpop.f32.mrb[0].mxu0
    %v464 = vadd.f32 0.0, %v463
    %v465 = vpop.f32.mrb[0].mxu0
    %v466 = vpop.f32.mrb[0].mxu0
    %v467 = vadd.f32 0.0, %v466
    %v468 = vpop.f32.mrb[0].mxu0
    %469 = vmatprep.mubr.bf16.mxu0 0
    %470 = vmatmul.mubr.bf16.gmra.mrb[0].mxu0 %v262
    %v471 = vpop.f32.mrb[0].mxu0
    %v472 = vadd.f32 0.0, %v471
    %v473 = vpop.f32.mrb[0].mxu0
    %v474 = vpop.f32.mrb[0].mxu0
    %v475 = vadd.f32 0.0, %v474
    %v476 = vpop.f32.mrb[0].mxu0
    %477 = vmatprep.mubr.bf16.mxu0 0
    %478 = vmatmul.mubr.bf16.gmra.mrb[0].mxu0 %v263
    %v479 = vpop.f32.mrb[0].mxu0
    %v480 = vadd.f32 0.0, %v479
    %v481 = vpop.f32.mrb[0].mxu0
    %v482 = vpop.f32.mrb[0].mxu0
    %v483 = vadd.f32 0.0, %v482
    %v484 = vpop.f32.mrb[0].mxu0
    %485 = vmatprep.mubr.bf16.mxu0 0
    %486 = vmatmul.mubr.bf16.gmra.mrb[0].mxu0 %v264
    %v487 = vpop.f32.mrb[0].mxu0
    %v488 = vadd.f32 0.0, %v487
    %v489 = vpop.f32.mrb[0].mxu0
    %v490 = vpop.f32.mrb[0].mxu0
    %v491 = vadd.f32 0.0, %v490
    %v492 = vpop.f32.mrb[0].mxu0
    %493 = vmatprep.mubr.bf16.mxu0 0
    %494 = vmatmul.mubr.bf16.gmra.mrb[0].mxu0 %v265
    %v495 = vpop.f32.mrb[0].mxu0
    %v496 = vadd.f32 0.0, %v495
    %v497 = vpop.f32.mrb[0].mxu0
    %v498 = vpop.f32.mrb[0].mxu0
    %v499 = vadd.f32 0.0, %v498
    %v500 = vpop.f32.mrb[0].mxu0
    %501 = vmatprep.mubr.bf16.mxu0 0
    %502 = vmatmul.mubr.bf16.gmra.mrb[0].mxu0 %v266
    %v503 = vpop.f32.mrb[0].mxu0
    %v504 = vadd.f32 0.0, %v503
    %v505 = vpop.f32.mrb[0].mxu0
    %v506 = vpop.f32.mrb[0].mxu0
    %v507 = vadd.f32 0.0, %v506
    %v508 = vpop.f32.mrb[0].mxu0
    %509 = vmatprep.mubr.bf16.mxu0 0
    %510 = vmatmul.mubr.bf16.gmra.mrb[0].mxu0 %v267
    %v511 = vpop.f32.mrb[0].mxu0
    %v512 = vadd.f32 0.0, %v511
    %v513 = vpop.f32.mrb[0].mxu0
    %v514 = vpop.f32.mrb[0].mxu0
    %v515 = vadd.f32 0.0, %v514
    %v516 = vpop.f32.mrb[0].mxu0
    %517 = vmatprep.mubr.bf16.mxu0 0
    %518 = vmatmul.mubr.bf16.gmra.mrb[0].mxu0 %v268
    %v519 = vpop.f32.mrb[0].mxu0
    %v520 = vadd.f32 0.0, %v519
    %v521 = vpop.f32.mrb[0].mxu0
    %v522 = vpop.f32.mrb[0].mxu0
    %v523 = vadd.f32 0.0, %v522
    %v524 = vpop.f32.mrb[0].mxu0
    %525 = vmatprep.mubr.bf16.mxu0 0
    %526 = vmatmul.mubr.bf16.gmra.mrb[0].mxu0 %v269
    %v527 = vpop.f32.mrb[0].mxu0
    %v528 = vadd.f32 0.0, %v527
    %v529 = vpop.f32.mrb[0].mxu0
    %v530 = vpop.f32.mrb[0].mxu0
    %v531 = vadd.f32 0.0, %v530
    %v532 = vpop.f32.mrb[0].mxu0
    %533 = vmatprep.mubr.bf16.mxu0 0
    %534 = vmatmul.mubr.bf16.gmra.mrb[0].mxu0 %v270
    %v535 = vpop.f32.mrb[0].mxu0
    %v536 = vadd.f32 0.0, %v535
    %v537 = vpop.f32.mrb[0].mxu0
    %v538 = vpop.f32.mrb[0].mxu0
    %v539 = vadd.f32 0.0, %v538
    %v540 = vpop.f32.mrb[0].mxu0
    %541 = vmatprep.mubr.bf16.mxu0 0
    %542 = vmatmul.mubr.bf16.gmra.mrb[0].mxu0 %v271
    %v543 = vpop.f32.mrb[0].mxu0
    %v544 = vadd.f32 0.0, %v543
    %v545 = vpop.f32.mrb[0].mxu0
    %v546 = vpop.f32.mrb[0].mxu0
    %v547 = vadd.f32 0.0, %v546
    %v548 = vpop.f32.mrb[0].mxu0
    %549 = vmatprep.mubr.bf16.mxu0 0
    %550 = vmatmul.mubr.bf16.gmra.mrb[0].mxu0 %v272
    %v551 = vpop.f32.mrb[0].mxu0
    %v552 = vadd.f32 0.0, %v551
    %v553 = vpop.f32.mrb[0].mxu0
    %v554 = vpop.f32.mrb[0].mxu0
    %v555 = vadd.f32 0.0, %v554
    %v556 = vpop.f32.mrb[0].mxu0
    %557 = vmatprep.mubr.bf16.mxu0 0
    %558 = vmatmul.mubr.bf16.gmra.mrb[0].mxu0 %v273
    %v559 = vpop.f32.mrb[0].mxu0
    %v560 = vadd.f32 0.0, %v559
    %v561 = vpop.f32.mrb[0].mxu0
    %v562 = vpop.f32.mrb[0].mxu0
    %v563 = vadd.f32 0.0, %v562
    %v564 = vpop.f32.mrb[0].mxu0
    %565 = vmatprep.mubr.bf16.mxu0 0
    %566 = vmatmul.mubr.bf16.gmra.mrb[0].mxu0 %v274
    %v567 = vpop.f32.mrb[0].mxu0
    %v568 = vadd.f32 0.0, %v567
    %v569 = vpop.f32.mrb[0].mxu0
    %v570 = vpop.f32.mrb[0].mxu0
    %v571 = vadd.f32 0.0, %v570
    %v572 = vpop.f32.mrb[0].mxu0
    %573 = vmatprep.mubr.bf16.mxu0 0
    %574 = vmatmul.mubr.bf16.gmra.mrb[0].mxu0 %v275
    %v575 = vpop.f32.mrb[0].mxu0
    %v576 = vadd.f32 0.0, %v575
    %v577 = vpop.f32.mrb[0].mxu0
    %v578 = vpop.f32.mrb[0].mxu0
    %v579 = vadd.f32 0.0, %v578
    %v580 = vpop.f32.mrb[0].mxu0
    %581 = vmatprep.mubr.bf16.mxu0 0
    %582 = vmatmul.mubr.bf16.gmra.mrb[0].mxu0 %v276
    %v583 = vpop.f32.mrb[0].mxu0
    %v584 = vadd.f32 0.0, %v583
    %v585 = vpop.f32.mrb[0].mxu0
    %v586 = vpop.f32.mrb[0].mxu0
    %v587 = vadd.f32 0.0, %v586
    %v588 = vpop.f32.mrb[0].mxu0
    %589 = vmatprep.mubr.bf16.mxu0 0
    %590 = vmatmul.mubr.bf16.gmra.mrb[0].mxu0 %v277
    %v591 = vpop.f32.mrb[0].mxu0
    %v592 = vadd.f32 0.0, %v591
    %v593 = vpop.f32.mrb[0].mxu0
    %v594 = vpop.f32.mrb[0].mxu0
    %v595 = vadd.f32 0.0, %v594
    %v596 = vpop.f32.mrb[0].mxu0
    %597 = vmatprep.mubr.bf16.mxu0 0
    %598 = vmatmul.mubr.bf16.gmra.mrb[0].mxu0 %v278
    %v599 = vpop.f32.mrb[0].mxu0
    %v600 = vadd.f32 0.0, %v599
    %v601 = vpop.f32.mrb[0].mxu0
    %v602 = vpop.f32.mrb[0].mxu0
    %v603 = vadd.f32 0.0, %v602
    %v604 = vpop.f32.mrb[0].mxu0
    %605 = vmatprep.mubr.bf16.mxu0 0
    %606 = vmatmul.mubr.bf16.gmra.mrb[0].mxu0 %v279
    %v607 = vpop.f32.mrb[0].mxu0
    %v608 = vadd.f32 0.0, %v607
    %v609 = vpop.f32.mrb[0].mxu0
    %v610 = vpop.f32.mrb[0].mxu0
    %v611 = vadd.f32 0.0, %v610
    %v612 = vpop.f32.mrb[0].mxu0
    %613 = vmatprep.mubr.bf16.mxu0 0
    %614 = vmatmul.mubr.bf16.gmra.mrb[0].mxu0 %v280
    %v615 = vpop.f32.mrb[0].mxu0
    %v616 = vadd.f32 0.0, %v615
    %v617 = vpop.f32.mrb[0].mxu0
    %v618 = vpop.f32.mrb[0].mxu0
    %v619 = vadd.f32 0.0, %v618
    %v620 = vpop.f32.mrb[0].mxu0
    %621 = vmatprep.mubr.bf16.mxu0 0
    %622 = vmatmul.mubr.bf16.gmra.mrb[0].mxu0 %v281
    %v623 = vpop.f32.mrb[0].mxu0
    %v624 = vadd.f32 0.0, %v623
    %v625 = vpop.f32.mrb[0].mxu0
    %v626 = vpop.f32.mrb[0].mxu0
    %v627 = vadd.f32 0.0, %v626
    %v628 = vpop.f32.mrb[0].mxu0
    %629 = vmatprep.mubr.bf16.mxu0 0
    %630 = vmatmul.mubr.bf16.gmra.mrb[0].mxu0 %v282
    %v631 = vpop.f32.mrb[0].mxu0
    %v632 = vadd.f32 0.0, %v631
    %v633 = vpop.f32.mrb[0].mxu0
    %v634 = vpop.f32.mrb[0].mxu0
    %v635 = vadd.f32 0.0, %v634
    %v636 = vpop.f32.mrb[0].mxu0
    %637 = vmatprep.mubr.bf16.mxu0 0
    %638 = vmatmul.mubr.bf16.gmra.mrb[0].mxu0 %v283
    %v639 = vpop.f32.mrb[0].mxu0
    %v640 = vadd.f32 0.0, %v639
    %v641 = vpop.f32.mrb[0].mxu0
    %v642 = vpop.f32.mrb[0].mxu0
    %v643 = vadd.f32 0.0, %v642
    %v644 = vpop.f32.mrb[0].mxu0
    %645 = vmatprep.mubr.bf16.mxu0 0
    %646 = vmatmul.mubr.bf16.gmra.mrb[0].mxu0 %v284
    %v647 = vpop.f32.mrb[0].mxu0
    %v648 = vadd.f32 0.0, %v647
    %v649 = vpop.f32.mrb[0].mxu0
    %v650 = vpop.f32.mrb[0].mxu0
    %v651 = vadd.f32 0.0, %v650
    %v652 = vpop.f32.mrb[0].mxu0
    %653 = vdwg.mxu0
    %v654 = vadd.f32 %v400, %v403
    %v655 = vadd.f32 %v654, %v408
    %v656 = vadd.f32 %v655, %v411
    %v657 = vadd.f32 %v656, %v416
    %v658 = vadd.f32 %v657, %v419
    %v659 = vadd.f32 %v658, %v424
    %v660 = vadd.f32 %v659, %v427
    %v661 = vadd.f32 %v660, %v432
    %v662 = vadd.f32 %v661, %v435
    %v663 = vadd.f32 %v662, %v440
    %v664 = vadd.f32 %v663, %v443
    %v665 = vadd.f32 %v664, %v448
    %v666 = vadd.f32 %v665, %v451
    %v667 = vadd.f32 %v666, %v456
    %v668 = vadd.f32 %v667, %v459
    %v669 = vadd.f32 %v668, %v464
    %v670 = vadd.f32 %v669, %v467
    %v671 = vadd.f32 %v670, %v472
    %v672 = vadd.f32 %v671, %v475
    %v673 = vadd.f32 %v672, %v480
    %v674 = vadd.f32 %v673, %v483
    %v675 = vadd.f32 %v674, %v488
    %v676 = vadd.f32 %v675, %v491
    %v677 = vadd.f32 %v676, %v496
    %v678 = vadd.f32 %v677, %v499
    %v679 = vadd.f32 %v678, %v504
    %v680 = vadd.f32 %v679, %v507
    %v681 = vadd.f32 %v680, %v512
    %v682 = vadd.f32 %v681, %v515
    %v683 = vadd.f32 %v682, %v520
    %v684 = vadd.f32 %v683, %v523
    %v685 = vadd.f32 %v684, %v528
    %v686 = vadd.f32 %v685, %v531
    %v687 = vadd.f32 %v686, %v536
    %v688 = vadd.f32 %v687, %v539
    %v689 = vadd.f32 %v688, %v544
    %v690 = vadd.f32 %v689, %v547
    %v691 = vadd.f32 %v690, %v552
    %v692 = vadd.f32 %v691, %v555
    %v693 = vadd.f32 %v692, %v560
    %v694 = vadd.f32 %v693, %v563
    %v695 = vadd.f32 %v694, %v568
    %v696 = vadd.f32 %v695, %v571
    %v697 = vadd.f32 %v696, %v576
    %v698 = vadd.f32 %v697, %v579
    %v699 = vadd.f32 %v698, %v584
    %v700 = vadd.f32 %v699, %v587
    %v701 = vadd.f32 %v700, %v592
    %v702 = vadd.f32 %v701, %v595
    %v703 = vadd.f32 %v702, %v600
    %v704 = vadd.f32 %v703, %v603
    %v705 = vadd.f32 %v704, %v608
    %v706 = vadd.f32 %v705, %v611
    %v707 = vadd.f32 %v706, %v616
    %v708 = vadd.f32 %v707, %v619
    %v709 = vadd.f32 %v708, %v624
    %v710 = vadd.f32 %v709, %v627
    %v711 = vadd.f32 %v710, %v632
    %v712 = vadd.f32 %v711, %v635
    %v713 = vadd.f32 %v712, %v640
    %v714 = vadd.f32 %v713, %v643
    %v715 = vadd.f32 %v714, %v648
    %v716 = vadd.f32 %v715, %v651
    %v717 = vrot.slane %v716, 4
    %v718 = vadd.f32 %v716, %v717
    %v719 = vrot.slane %v718, 2
    %v720 = vadd.f32 %v718, %v719
    %v721 = vrot.slane %v720, 1
    %v722 = vadd.f32 %v720, %v721
    %723 = vst [vmem:[#allocation8] sm:$0x1] %v722
    %v724 = vmul.f32 %v400, %v400
    %v725 = vmul.f32 %v403, %v403
    %v726 = vmul.f32 %v408, %v408
    %v727 = vmul.f32 %v411, %v411
    %v728 = vmul.f32 %v416, %v416
    %v729 = vmul.f32 %v419, %v419
    %v730 = vmul.f32 %v424, %v424
    %v731 = vmul.f32 %v427, %v427
    %v732 = vmul.f32 %v432, %v432
    %v733 = vmul.f32 %v435, %v435
    %v734 = vmul.f32 %v440, %v440
    %v735 = vmul.f32 %v443, %v443
    %v736 = vmul.f32 %v448, %v448
    %v737 = vmul.f32 %v451, %v451
    %v738 = vmul.f32 %v456, %v456
    %v739 = vmul.f32 %v459, %v459
    %v740 = vmul.f32 %v464, %v464
    %v741 = vmul.f32 %v467, %v467
    %v742 = vmul.f32 %v472, %v472
    %v743 = vmul.f32 %v475, %v475
    %v744 = vmul.f32 %v480, %v480
    %v745 = vmul.f32 %v483, %v483
    %v746 = vmul.f32 %v488, %v488
    %v747 = vmul.f32 %v491, %v491
    %v748 = vmul.f32 %v496, %v496
    %v749 = vmul.f32 %v499, %v499
    %v750 = vmul.f32 %v504, %v504
    %v751 = vmul.f32 %v507, %v507
    %v752 = vmul.f32 %v512, %v512
    %v753 = vmul.f32 %v515, %v515
    %v754 = vmul.f32 %v520, %v520
    %v755 = vmul.f32 %v523, %v523
    %v756 = vmul.f32 %v528, %v528
    %v757 = vmul.f32 %v531, %v531
    %v758 = vmul.f32 %v536, %v536
    %v759 = vmul.f32 %v539, %v539
    %v760 = vmul.f32 %v544, %v544
    %v761 = vmul.f32 %v547, %v547
    %v762 = vmul.f32 %v552, %v552
    %v763 = vmul.f32 %v555, %v555
    %v764 = vmul.f32 %v560, %v560
    %v765 = vmul.f32 %v563, %v563
    %v766 = vmul.f32 %v568, %v568
    %v767 = vmul.f32 %v571, %v571
    %v768 = vmul.f32 %v576, %v576
    %v769 = vmul.f32 %v579, %v579
    %v770 = vmul.f32 %v584, %v584
    %v771 = vmul.f32 %v587, %v587
    %v772 = vmul.f32 %v592, %v592
    %v773 = vmul.f32 %v595, %v595
    %v774 = vmul.f32 %v600, %v600
    %v775 = vmul.f32 %v603, %v603
    %v776 = vmul.f32 %v608, %v608
    %v777 = vmul.f32 %v611, %v611
    %v778 = vmul.f32 %v616, %v616
    %v779 = vmul.f32 %v619, %v619
    %v780 = vmul.f32 %v624, %v624
    %v781 = vmul.f32 %v627, %v627
    %v782 = vmul.f32 %v632, %v632
    %v783 = vmul.f32 %v635, %v635
    %v784 = vmul.f32 %v640, %v640
    %v785 = vmul.f32 %v643, %v643
    %v786 = vmul.f32 %v648, %v648
    %v787 = vmul.f32 %v651, %v651
    %v788 = vadd.f32 %v724, %v725
    %v789 = vadd.f32 %v788, %v726
    %v790 = vadd.f32 %v789, %v727
    %v791 = vadd.f32 %v790, %v728
    %v792 = vadd.f32 %v791, %v729
    %v793 = vadd.f32 %v792, %v730
    %v794 = vadd.f32 %v793, %v731
    %v795 = vadd.f32 %v794, %v732
    %v796 = vadd.f32 %v795, %v733
    %v797 = vadd.f32 %v796, %v734
    %v798 = vadd.f32 %v797, %v735
    %v799 = vadd.f32 %v798, %v736
    %v800 = vadd.f32 %v799, %v737
    %v801 = vadd.f32 %v800, %v738
    %v802 = vadd.f32 %v801, %v739
    %v803 = vadd.f32 %v802, %v740
    %v804 = vadd.f32 %v803, %v741
    %v805 = vadd.f32 %v804, %v742
    %v806 = vadd.f32 %v805, %v743
    %v807 = vadd.f32 %v806, %v744
    %v808 = vadd.f32 %v807, %v745
    %v809 = vadd.f32 %v808, %v746
    %v810 = vadd.f32 %v809, %v747
    %v811 = vadd.f32 %v810, %v748
    %v812 = vadd.f32 %v811, %v749
    %v813 = vadd.f32 %v812, %v750
    %v814 = vadd.f32 %v813, %v751
    %v815 = vadd.f32 %v814, %v752
    %v816 = vadd.f32 %v815, %v753
    %v817 = vadd.f32 %v816, %v754
    %v818 = vadd.f32 %v817, %v755
    %v819 = vadd.f32 %v818, %v756
    %v820 = vadd.f32 %v819, %v757
    %v821 = vadd.f32 %v820, %v758
    %v822 = vadd.f32 %v821, %v759
    %v823 = vadd.f32 %v822, %v760
    %v824 = vadd.f32 %v823, %v761
    %v825 = vadd.f32 %v824, %v762
    %v826 = vadd.f32 %v825, %v763
    %v827 = vadd.f32 %v826, %v764
    %v828 = vadd.f32 %v827, %v765
    %v829 = vadd.f32 %v828, %v766
    %v830 = vadd.f32 %v829, %v767
    %v831 = vadd.f32 %v830, %v768
    %v832 = vadd.f32 %v831, %v769
    %v833 = vadd.f32 %v832, %v770
    %v834 = vadd.f32 %v833, %v771
    %v835 = vadd.f32 %v834, %v772
    %v836 = vadd.f32 %v835, %v773
    %v837 = vadd.f32 %v836, %v774
    %v838 = vadd.f32 %v837, %v775
    %v839 = vadd.f32 %v838, %v776
    %v840 = vadd.f32 %v839, %v777
    %v841 = vadd.f32 %v840, %v778
    %v842 = vadd.f32 %v841, %v779
    %v843 = vadd.f32 %v842, %v780
    %v844 = vadd.f32 %v843, %v781
    %v845 = vadd.f32 %v844, %v782
    %v846 = vadd.f32 %v845, %v783
    %v847 = vadd.f32 %v846, %v784
    %v848 = vadd.f32 %v847, %v785
    %v849 = vadd.f32 %v848, %v786
    %v850 = vadd.f32 %v849, %v787
    %v851 = vrot.slane %v850, 4
    %v852 = vadd.f32 %v850, %v851
    %v853 = vrot.slane %v852, 2
    %v854 = vadd.f32 %v852, %v853
    %v855 = vrot.slane %v854, 1
    %v856 = vadd.f32 %v854, %v855
    %857 = vst [vmem:[#allocation10] sm:$0x1] %v856
    %v858 = vpack.c.bf16 %v403, %v400
    %v859 = vpack.c.bf16 %v411, %v408
    %v860 = vpack.c.bf16 %v419, %v416
    %v861 = vpack.c.bf16 %v427, %v424
    %v862 = vpack.c.bf16 %v435, %v432
    %v863 = vpack.c.bf16 %v443, %v440
    %v864 = vpack.c.bf16 %v451, %v448
    %v865 = vpack.c.bf16 %v459, %v456
    %v866 = vpack.c.bf16 %v467, %v464
    %v867 = vpack.c.bf16 %v475, %v472
    %v868 = vpack.c.bf16 %v483, %v480
    %v869 = vpack.c.bf16 %v491, %v488
    %v870 = vpack.c.bf16 %v499, %v496
    %v871 = vpack.c.bf16 %v507, %v504
    %v872 = vpack.c.bf16 %v515, %v512
    %v873 = vpack.c.bf16 %v523, %v520
    %v874 = vpack.c.bf16 %v531, %v528
    %v875 = vpack.c.bf16 %v539, %v536
    %v876 = vpack.c.bf16 %v547, %v544
    %v877 = vpack.c.bf16 %v555, %v552
    %v878 = vpack.c.bf16 %v563, %v560
    %v879 = vpack.c.bf16 %v571, %v568
    %v880 = vpack.c.bf16 %v579, %v576
    %v881 = vpack.c.bf16 %v587, %v584
    %v882 = vpack.c.bf16 %v595, %v592
    %v883 = vpack.c.bf16 %v603, %v600
    %v884 = vpack.c.bf16 %v611, %v608
    %v885 = vpack.c.bf16 %v619, %v616
    %v886 = vpack.c.bf16 %v627, %v624
    %v887 = vpack.c.bf16 %v635, %v632
    %v888 = vpack.c.bf16 %v643, %v640
    %v889 = vpack.c.bf16 %v651, %v648
    %v922 = vunpack.c.l.b16 %v858
    %v923 = vunpack.c.h.b16 %v858
    %v924 = vunpack.c.l.b16 %v859
    %v925 = vunpack.c.h.b16 %v859
    %v926 = vunpack.c.l.b16 %v860
    %v927 = vunpack.c.h.b16 %v860
    %v928 = vunpack.c.l.b16 %v861
    %v929 = vunpack.c.h.b16 %v861
    %v930 = vunpack.c.l.b16 %v862
    %v931 = vunpack.c.h.b16 %v862
    %v932 = vunpack.c.l.b16 %v863
    %v933 = vunpack.c.h.b16 %v863
    %v934 = vunpack.c.l.b16 %v864
    %v935 = vunpack.c.h.b16 %v864
    %v936 = vunpack.c.l.b16 %v865
    %v937 = vunpack.c.h.b16 %v865
    %v938 = vunpack.c.l.b16 %v866
    %v939 = vunpack.c.h.b16 %v866
    %v940 = vunpack.c.l.b16 %v867
    %v941 = vunpack.c.h.b16 %v867
    %v942 = vunpack.c.l.b16 %v868
    %v943 = vunpack.c.h.b16 %v868
    %v944 = vunpack.c.l.b16 %v869
    %v945 = vunpack.c.h.b16 %v869
    %v946 = vunpack.c.l.b16 %v870
    %v947 = vunpack.c.h.b16 %v870
    %v948 = vunpack.c.l.b16 %v871
    %v949 = vunpack.c.h.b16 %v871
    %v950 = vunpack.c.l.b16 %v872
    %v951 = vunpack.c.h.b16 %v872
    %v952 = vunpack.c.l.b16 %v873
    %v953 = vunpack.c.h.b16 %v873
    %v954 = vunpack.c.l.b16 %v874
    %v955 = vunpack.c.h.b16 %v874
    %v956 = vunpack.c.l.b16 %v875
    %v957 = vunpack.c.h.b16 %v875
    %v958 = vunpack.c.l.b16 %v876
    %v959 = vunpack.c.h.b16 %v876
    %v960 = vunpack.c.l.b16 %v877
    %v961 = vunpack.c.h.b16 %v877
    %v962 = vunpack.c.l.b16 %v878
    %v963 = vunpack.c.h.b16 %v878
    %v964 = vunpack.c.l.b16 %v879
    %v965 = vunpack.c.h.b16 %v879
    %v966 = vunpack.c.l.b16 %v880
    %v967 = vunpack.c.h.b16 %v880
    %v968 = vunpack.c.l.b16 %v881
    %v969 = vunpack.c.h.b16 %v881
    %v970 = vunpack.c.l.b16 %v882
    %v971 = vunpack.c.h.b16 %v882
    %v972 = vunpack.c.l.b16 %v883
    %v973 = vunpack.c.h.b16 %v883
    %v974 = vunpack.c.l.b16 %v884
    %v975 = vunpack.c.h.b16 %v884
    %v976 = vunpack.c.l.b16 %v885
    %v977 = vunpack.c.h.b16 %v885
    %v978 = vunpack.c.l.b16 %v886
    %v979 = vunpack.c.h.b16 %v886
    %v980 = vunpack.c.l.b16 %v887
    %v981 = vunpack.c.h.b16 %v887
    %v982 = vunpack.c.l.b16 %v888
    %v983 = vunpack.c.h.b16 %v888
    %v984 = vunpack.c.l.b16 %v889
    %v985 = vunpack.c.h.b16 %v889
    %v986 = vpack.c.b16 %v922, %v922
    %v987 = vpack.c.b16 %v923, %v923
    %v988 = vpack.c.b16 %v924, %v924
    %v989 = vpack.c.b16 %v925, %v925
    %v990 = vpack.c.b16 %v926, %v926
    %v991 = vpack.c.b16 %v927, %v927
    %v992 = vpack.c.b16 %v928, %v928
    %v993 = vpack.c.b16 %v929, %v929
    %v994 = vpack.c.b16 %v930, %v930
    %v995 = vpack.c.b16 %v931, %v931
    %v996 = vpack.c.b16 %v932, %v932
    %v997 = vpack.c.b16 %v933, %v933
    %v998 = vpack.c.b16 %v934, %v934
    %v999 = vpack.c.b16 %v935, %v935
    %v1000 = vpack.c.b16 %v936, %v936
    %v1001 = vpack.c.b16 %v937, %v937
    %v1002 = vpack.c.b16 %v938, %v938
    %v1003 = vpack.c.b16 %v939, %v939
    %v1004 = vpack.c.b16 %v940, %v940
    %v1005 = vpack.c.b16 %v941, %v941
    %v1006 = vpack.c.b16 %v942, %v942
    %v1007 = vpack.c.b16 %v943, %v943
    %v1008 = vpack.c.b16 %v944, %v944
    %v1009 = vpack.c.b16 %v945, %v945
    %v1010 = vpack.c.b16 %v946, %v946
    %v1011 = vpack.c.b16 %v947, %v947
    %v1012 = vpack.c.b16 %v948, %v948
    %v1013 = vpack.c.b16 %v949, %v949
    %v1014 = vpack.c.b16 %v950, %v950
    %v1015 = vpack.c.b16 %v951, %v951
    %v1016 = vpack.c.b16 %v952, %v952
    %v1017 = vpack.c.b16 %v953, %v953
    %v1018 = vpack.c.b16 %v954, %v954
    %v1019 = vpack.c.b16 %v955, %v955
    %v1020 = vpack.c.b16 %v956, %v956
    %v1021 = vpack.c.b16 %v957, %v957
    %v1022 = vpack.c.b16 %v958, %v958
    %v1023 = vpack.c.b16 %v959, %v959
    %v1024 = vpack.c.b16 %v960, %v960
    %v1025 = vpack.c.b16 %v961, %v961
    %v1026 = vpack.c.b16 %v962, %v962
    %v1027 = vpack.c.b16 %v963, %v963
    %v1028 = vpack.c.b16 %v964, %v964
    %v1029 = vpack.c.b16 %v965, %v965
    %v1030 = vpack.c.b16 %v966, %v966
    %v1031 = vpack.c.b16 %v967, %v967
    %v1032 = vpack.c.b16 %v968, %v968
    %v1033 = vpack.c.b16 %v969, %v969
    %v1034 = vpack.c.b16 %v970, %v970
    %v1035 = vpack.c.b16 %v971, %v971
    %v1036 = vpack.c.b16 %v972, %v972
    %v1037 = vpack.c.b16 %v973, %v973
    %v1038 = vpack.c.b16 %v974, %v974
    %v1039 = vpack.c.b16 %v975, %v975
    %v1040 = vpack.c.b16 %v976, %v976
    %v1041 = vpack.c.b16 %v977, %v977
    %v1042 = vpack.c.b16 %v978, %v978
    %v1043 = vpack.c.b16 %v979, %v979
    %v1044 = vpack.c.b16 %v980, %v980
    %v1045 = vpack.c.b16 %v981, %v981
    %v1046 = vpack.c.b16 %v982, %v982
    %v1047 = vpack.c.b16 %v983, %v983
    %v1048 = vpack.c.b16 %v984, %v984
    %v1049 = vpack.c.b16 %v985, %v985
    %1114 = vst [vmem:[#allocation7] sm:$0xf] %v986
    %1115 = vst [vmem:[#allocation7 + $0x4] sm:$0xf] %v987
    %1116 = vst [vmem:[#allocation7 + $0x8] sm:$0xf] %v988
    %1117 = vst [vmem:[#allocation7 + $0xc] sm:$0xf] %v989
    %1118 = vst [vmem:[#allocation7 + $0x10] sm:$0xf] %v990
    %1119 = vst [vmem:[#allocation7 + $0x14] sm:$0xf] %v991
    %1120 = vst [vmem:[#allocation7 + $0x18] sm:$0xf] %v992
    %1121 = vst [vmem:[#allocation7 + $0x1c] sm:$0xf] %v993
    %1122 = vst [vmem:[#allocation7 + $0x20] sm:$0xf] %v994
    %1123 = vst [vmem:[#allocation7 + $0x24] sm:$0xf] %v995
    %1124 = vst [vmem:[#allocation7 + $0x28] sm:$0xf] %v996
    %1125 = vst [vmem:[#allocation7 + $0x2c] sm:$0xf] %v997
    %1126 = vst [vmem:[#allocation7 + $0x30] sm:$0xf] %v998
    %1127 = vst [vmem:[#allocation7 + $0x34] sm:$0xf] %v999
    %1128 = vst [vmem:[#allocation7 + $0x38] sm:$0xf] %v1000
    %1129 = vst [vmem:[#allocation7 + $0x3c] sm:$0xf] %v1001
    %1130 = vst [vmem:[#allocation7 + $0x40] sm:$0xf] %v1002
    %1131 = vst [vmem:[#allocation7 + $0x44] sm:$0xf] %v1003
    %1132 = vst [vmem:[#allocation7 + $0x48] sm:$0xf] %v1004
    %1133 = vst [vmem:[#allocation7 + $0x4c] sm:$0xf] %v1005
    %1134 = vst [vmem:[#allocation7 + $0x50] sm:$0xf] %v1006
    %1135 = vst [vmem:[#allocation7 + $0x54] sm:$0xf] %v1007
    %1136 = vst [vmem:[#allocation7 + $0x58] sm:$0xf] %v1008
    %1137 = vst [vmem:[#allocation7 + $0x5c] sm:$0xf] %v1009
    %1138 = vst [vmem:[#allocation7 + $0x60] sm:$0xf] %v1010
    %1139 = vst [vmem:[#allocation7 + $0x64] sm:$0xf] %v1011
    %1140 = vst [vmem:[#allocation7 + $0x68] sm:$0xf] %v1012
    %1141 = vst [vmem:[#allocation7 + $0x6c] sm:$0xf] %v1013
    %1142 = vst [vmem:[#allocation7 + $0x70] sm:$0xf] %v1014
    %1143 = vst [vmem:[#allocation7 + $0x74] sm:$0xf] %v1015
    %1144 = vst [vmem:[#allocation7 + $0x78] sm:$0xf] %v1016
    %1145 = vst [vmem:[#allocation7 + $0x7c] sm:$0xf] %v1017
    %1146 = vst [vmem:[#allocation7 + $0x80] sm:$0xf] %v1018
    %1147 = vst [vmem:[#allocation7 + $0x84] sm:$0xf] %v1019
    %1148 = vst [vmem:[#allocation7 + $0x88] sm:$0xf] %v1020
    %1149 = vst [vmem:[#allocation7 + $0x8c] sm:$0xf] %v1021
    %1150 = vst [vmem:[#allocation7 + $0x90] sm:$0xf] %v1022
    %1151 = vst [vmem:[#allocation7 + $0x94] sm:$0xf] %v1023
    %1152 = vst [vmem:[#allocation7 + $0x98] sm:$0xf] %v1024
    %1153 = vst [vmem:[#allocation7 + $0x9c] sm:$0xf] %v1025
    %1154 = vst [vmem:[#allocation7 + $0xa0] sm:$0xf] %v1026
    %1155 = vst [vmem:[#allocation7 + $0xa4] sm:$0xf] %v1027
    %1156 = vst [vmem:[#allocation7 + $0xa8] sm:$0xf] %v1028
    %1157 = vst [vmem:[#allocation7 + $0xac] sm:$0xf] %v1029
    %1158 = vst [vmem:[#allocation7 + $0xb0] sm:$0xf] %v1030
    %1159 = vst [vmem:[#allocation7 + $0xb4] sm:$0xf] %v1031
    %1160 = vst [vmem:[#allocation7 + $0xb8] sm:$0xf] %v1032
    %1161 = vst [vmem:[#allocation7 + $0xbc] sm:$0xf] %v1033
    %1162 = vst [vmem:[#allocation7 + $0xc0] sm:$0xf] %v1034
    %1163 = vst [vmem:[#allocation7 + $0xc4] sm:$0xf] %v1035
    %1164 = vst [vmem:[#allocation7 + $0xc8] sm:$0xf] %v1036
    %1165 = vst [vmem:[#allocation7 + $0xcc] sm:$0xf] %v1037
    %1166 = vst [vmem:[#allocation7 + $0xd0] sm:$0xf] %v1038
    %1167 = vst [vmem:[#allocation7 + $0xd4] sm:$0xf] %v1039
    %1168 = vst [vmem:[#allocation7 + $0xd8] sm:$0xf] %v1040
    %1169 = vst [vmem:[#allocation7 + $0xdc] sm:$0xf] %v1041
    %1170 = vst [vmem:[#allocation7 + $0xe0] sm:$0xf] %v1042
    %1171 = vst [vmem:[#allocation7 + $0xe4] sm:$0xf] %v1043
    %1172 = vst [vmem:[#allocation7 + $0xe8] sm:$0xf] %v1044
    %1173 = vst [vmem:[#allocation7 + $0xec] sm:$0xf] %v1045
    %1174 = vst [vmem:[#allocation7 + $0xf0] sm:$0xf] %v1046
    %1175 = vst [vmem:[#allocation7 + $0xf4] sm:$0xf] %v1047
    %1176 = vst [vmem:[#allocation7 + $0xf8] sm:$0xf] %v1048
    %1177 = vst [vmem:[#allocation7 + $0xfc] sm:$0xf] %v1049
    // Predicated region
    $region18: #{tpu_custom_call.1} parent=1 // pred_check
      _
    $region19: #{tpu_custom_call.1} parent=1 // pred_check_branch
      %1179 = sbr.rel (0) target = $region21
    $region20: #{tpu_custom_call.1} parent=1 // pred_region
      %s1181 = ssub.s32 4096, 4096
      %1182 = vsyncadd [#allocation4], %s1181
      %s1183 = sshll.u32 [#allocation7], 4
      %s1184 = int_to_ptr.vmem [resolvable:$true] %s1183
      %1189 = dma.vmem_to_hbm [thread:$0]  %s1184, 4096, %s2, [#allocation4], 64, 64, 4
    $region21: #{tpu_custom_call.1} parent=1 // pred_fallthru
      _
    // Predicated region
    $region22: #{tpu_custom_call.1} parent=1 // pred_check
      _
    $region23: #{tpu_custom_call.1} parent=1 // pred_check_branch
      %1191 = sbr.rel (0) target = $region25
    $region24: #{tpu_custom_call.1} parent=1 // pred_region
      %s1193 = ssub.s32 16, 16
      %1194 = vsyncadd [#allocation9], %s1193
      %s1196 = sshll.u32 [#allocation8], 4
      %s1197 = int_to_ptr.vmem [resolvable:$true] %s1196
      %1199 = dma.vmem_to_hbm [thread:$0]  %s1197, 16, %s3, [#allocation9]
    $region25: #{tpu_custom_call.1} parent=1 // pred_fallthru
      _
    // Predicated region
    $region26: #{tpu_custom_call.1} parent=1 // pred_check
      _
    $region27: #{tpu_custom_call.1} parent=1 // pred_check_branch
      %1201 = sbr.rel (0) target = $region29
    $region28: #{tpu_custom_call.1} parent=1 // pred_region
      %s1203 = ssub.s32 16, 16
      %1204 = vsyncadd [#allocation9], %s1203
      %s1206 = sshll.u32 [#allocation10], 4
      %s1207 = int_to_ptr.vmem [resolvable:$true] %s1206
      %1209 = dma.vmem_to_hbm [thread:$0]  %s1207, 16, %s4, [#allocation9]
    $region29: #{tpu_custom_call.1} parent=1 // pred_fallthru
      _
    // Predicated region
    $region30: #{tpu_custom_call.1} parent=1 // pred_check
      _
    $region31: #{tpu_custom_call.1} parent=1 // pred_check_branch
      %1211 = sbr.rel (0) target = $region33
    $region32: #{tpu_custom_call.1} parent=1 // pred_region
      %1212 = dma.done [#allocation4], 4096
    $region33: #{tpu_custom_call.1} parent=1 // pred_fallthru
      _
    // Predicated region
    $region34: #{tpu_custom_call.1} parent=1 // pred_check
      _
    $region35: #{tpu_custom_call.1} parent=1 // pred_check_branch
      %1214 = sbr.rel (0) target = $region37
    $region36: #{tpu_custom_call.1} parent=1 // pred_region
      %1215 = dma.done [#allocation9], 16
    $region37: #{tpu_custom_call.1} parent=1 // pred_fallthru
      _
    // Predicated region
    $region38: #{tpu_custom_call.1} parent=1 // pred_check
      _
    $region39: #{tpu_custom_call.1} parent=1 // pred_check_branch
      %1217 = sbr.rel (0) target = $region41
    $region40: #{tpu_custom_call.1} parent=1 // pred_region
      %1218 = dma.done [#allocation9], 16
    $region41: #{tpu_custom_call.1} parent=1 // pred_fallthru
      _
    %1219 = vsyncpa [#allocation3], 1
    %1220 = vsyncpa [#allocation6], 1
    %1221 = vsyncpa [#allocation4], 1
    %1222 = vsyncpa [#allocation9], 1

</llo_original>
